<compile_context>
chip_gen: v7x
topology: tpu7x:2x2x1
jax: 0.10.0
libtpu: 0.0.40
codegen_flags: <defaults>
</compile_context>

<pallas_src>
import jax
import jax.numpy as jnp
from jax.experimental import pallas as pl
from jax.experimental.pallas import tpu as pltpu

_LANES = 128  # vreg lane width


# ---------------------------------------------------------------------------
# Kernel
# ---------------------------------------------------------------------------
def swish_kernel(x_ref, o_ref):
    x = x_ref[...].astype(jnp.float32)
    # Swish / SiLU: x * sigmoid(x).  exp lowers to the EUP slot.
    sig = 1.0 / (1.0 + jnp.exp(-x))
    o_ref[...] = (x * sig).astype(o_ref.dtype)


# ---------------------------------------------------------------------------
# Wrapper: works for any input shape / dtype, tiles over rows
# ---------------------------------------------------------------------------
def swish(x, *, tile_rows=2048):
    orig_shape = x.shape
    dtype = x.dtype
    total = x.size
    if total == 0:
        return x

    # Flatten to a lane-dense (rows, 128) slab.
    rows = -(-total // _LANES)            # ceil-div: rows of 128 lanes
    rows = -(-rows // 8) * 8              # pad rows to a sublane multiple of 8
    tile_rows = max(8, min(tile_rows, rows))
    grid_m = -(-rows // tile_rows)
    rows = grid_m * tile_rows             # pad rows to a tile multiple

    flat = x.reshape(-1)
    pad = rows * _LANES - total
    if pad:
        flat = jnp.pad(flat, (0, pad))    # swish(0) == 0, padding is harmless
    x2d = flat.reshape(rows, _LANES)

    out2d = pl.pallas_call(
        swish_kernel,
        grid=(grid_m,),
        in_specs=[pl.BlockSpec((tile_rows, _LANES), lambda i: (i, 0))],
        out_specs=pl.BlockSpec((tile_rows, _LANES), lambda i: (i, 0)),
        out_shape=jax.ShapeDtypeStruct((rows, _LANES), dtype),
        compiler_params=pltpu.CompilerParams(
            dimension_semantics=("parallel",)),
        cost_estimate=pl.CostEstimate(
            flops=4 * total,
            transcendentals=total,
            bytes_accessed=2 * total * x.dtype.itemsize),
    )(x2d)

    return out2d.reshape(-1)[:total].reshape(orig_shape)


# ---------------------------------------------------------------------------
# Demo / self-check
# ---------------------------------------------------------------------------
if __name__ == "__main__":
    key = jax.random.PRNGKey(0)
    x = jax.random.normal(key, (2, 4, 16, 16), dtype=jnp.float32)

    out = jax.jit(swish)(x)
    out = jax.block_until_ready(out)

    ref = x * jax.nn.sigmoid(x)
    assert out.shape == x.shape and out.dtype == x.dtype
    assert jnp.allclose(out, ref, atol=1e-5, rtol=1e-5)
    print("KERNEL_OK")
</pallas_src>

<mosaic_0001>
module attributes {stable_mosaic.version = 11 : i64} {
  func.func @swish_kernel(%arg0: i32, %arg1: memref<16x128xf32, #tpu.memory_space<vmem>>, %arg2: memref<16x128xf32, #tpu.memory_space<vmem>>) attributes {dimension_semantics = [#tpu.dimension_semantics<parallel>], iteration_bounds = array<i64: 1>, scalar_prefetch = 0 : i64, scratch_operands = 0 : i64, tpu.core_type = #tpu.core_type<tc>, window_params = [{transform_indices = @transform_0, window_bounds = array<i64: 16, 128>}, {transform_indices = @transform_1, window_bounds = array<i64: 16, 128>}]} {
    %c0 = arith.constant 0 : index
    %c0_0 = arith.constant 0 : index
    %0 = vector.load %arg1[%c0, %c0_0] : memref<16x128xf32, #tpu.memory_space<vmem>>, vector<16x128xf32>
    %cst = arith.constant 0.000000e+00 : f32
    %1 = vector.broadcast %cst : f32 to vector<16x128xf32>
    %2 = arith.subf %1, %0 : vector<16x128xf32>
    %3 = math.exp %2 : vector<16x128xf32>
    %cst_1 = arith.constant 1.000000e+00 : f32
    %4 = vector.broadcast %cst_1 : f32 to vector<16x128xf32>
    %5 = arith.addf %4, %3 : vector<16x128xf32>
    %cst_2 = arith.constant 1.000000e+00 : f32
    %6 = vector.broadcast %cst_2 : f32 to vector<16x128xf32>
    %7 = arith.divf %6, %5 : vector<16x128xf32>
    %8 = arith.mulf %0, %7 : vector<16x128xf32>
    %c0_3 = arith.constant 0 : index
    %c0_4 = arith.constant 0 : index
    %9 = vector.load %arg2[%c0_3, %c0_4] : memref<16x128xf32, #tpu.memory_space<vmem>>, vector<16x128xf32>
    tpu.vector_store %arg2[%c0_3, %c0_4], %8 {strides = array<i32>} : memref<16x128xf32, #tpu.memory_space<vmem>>, vector<16x128xf32>,
    return
  }
  func.func @transform_0(%arg0: i32) -> (i32, i32) {
    %c0_i32 = arith.constant 0 : i32
    %c0_i32_0 = arith.constant 0 : i32
    return %arg0, %c0_i32 : i32, i32
  }
  func.func @transform_1(%arg0: i32) -> (i32, i32) {
    %c0_i32 = arith.constant 0 : i32
    %c0_i32_0 = arith.constant 0 : i32
    return %arg0, %c0_i32 : i32, i32
  }
}

</mosaic_0001>

<llo_original>
// kernel: swish.1
$region0: #{swish.1}
  #allocation0 [shape = 'u32[]', space=smem, size = 0x4, offset = 0x4, fixed_abs, tag = 'smem constant byte address 0x4 - core index']
  #allocation1 [shape = 'u32[144,128]{1,0:T(1,128)}', space=vmem, size = 0x12000, scoped, tag = 'internal scratch']
  %s0 = inlined_call_operand.vmem [shape: f32[16,128], index: 0, kind: input, shape index: {}]
  %s1 = inlined_call_operand.vmem [shape: f32[16,128], index: 1, kind: output, shape index: {}]
  %s2 = sld [smem:[#allocation0]]
  $region14: #{swish.1} parent=0
    _
  %s4 = ssub.s32 1, %s2
  %s5 = scalar_select 0, %s4, %s2
  // Predicated region
  $region2: #{swish.1} parent=0 // pred_check
    _
  $region3: #{swish.1} parent=0 // pred_check_branch
    %7 = sbr.rel (0) target = $region5
  $region4: #{swish.1} parent=0 // pred_region
    _
  $region5: #{swish.1} parent=0 // pred_fallthru
    _
  %v8 = vld [vmem:[%s0] sm:$0xff]
  %v9 = vld [vmem:[%s0 + $0x8] sm:$0xff]
  %v10 = vsub.f32 0.0, %v8
  %v11 = vsub.f32 0.0, %v9
  %v12 = vmul.f32 %v10, 1.442695
  %v13 = vpow.pop %v12
  %v14 = vmul.f32 %v11, 1.442695
  %v15 = vpow.pop %v14
  %v16 = vadd.f32 %v13, 1.0
  %v17 = vadd.f32 %v15, 1.0
  %v18 = vrcp.pop %v16
  %v19 = vmul.f32 1.0, %v18
  %v20 = vrcp.pop %v17
  %v21 = vmul.f32 1.0, %v20
  %v22 = vmul.f32 %v8, %v19
  %v23 = vmul.f32 %v9, %v21
  %24 = vst [vmem:[%s1] sm:$0xff] %v22
  %25 = vst [vmem:[%s1 + $0x8] sm:$0xff] %v23
  // Predicated region
  $region6: #{swish.1} parent=0 // pred_check
    _
  $region7: #{swish.1} parent=0 // pred_check_branch
    %27 = sbr.rel (0) target = $region9
  $region8: #{swish.1} parent=0 // pred_region
    _
  $region9: #{swish.1} parent=0 // pred_fallthru
    _
  // Predicated region
  $region10: #{swish.1} parent=0 // pred_check
    _
  $region11: #{swish.1} parent=0 // pred_check_branch
    %29 = sbr.rel (0) target = $region13
  $region12: #{swish.1} parent=0 // pred_region
    _
  $region13: #{swish.1} parent=0 // pred_fallthru
    _

</llo_original>
